<compile_context>
chip_gen: v7x
topology: tpu7x:2x2x1
jax: 0.10.0
libtpu: 0.0.40
codegen_flags: <defaults>
</compile_context>

<pallas_src>
import functools

import jax
import jax.numpy as jnp
from jax.experimental import pallas as pl
from jax.experimental.pallas import tpu as pltpu


def gcn_kernel(x_ref, ghat_ref, wp_ref, b_ref, o_ref, rhs_ref, *,
               n_nodes, k_hops, batch_block, dim_out):
    """One (batch-chunk s, node-row-tile i) grid step.

    x_ref   : [BB*N, C]      bf16  node-feature chunk (constant across i)
    ghat_ref: [TILE_N, K*N]  bf16  row tile of hop-concatenated supports
    wp_ref  : [C, K*Q]       bf16  weights, columns ordered (k, q)
    b_ref   : [1, BB*Q]      f32   bias tiled across the batch chunk
    o_ref   : [TILE_N, BB*Q] f32   lane-packed output tile
    rhs_ref : [K*N, BB*Q]    bf16  VMEM scratch: restacked x[b] @ W_k
    """
    N, K, BB, Q = n_nodes, k_hops, batch_block, dim_out
    i = pl.program_id(1)                 # node-row tile (inner, "arbitrary")

    # Stage A: run once per batch chunk (i == 0); the result is carried in the
    # scratch across all row tiles of this chunk.  Contraction dim is only C,
    # so this is a tiny fraction of the MXU work.
    @pl.when(i == 0)
    def _():
        y = jnp.dot(x_ref[...], wp_ref[...],
                    preferred_element_type=jnp.float32)          # [BB*N, K*Q]
        y = y.astype(rhs_ref.dtype)
        # Restack via plain scratch stores (no slice+concat chains):
        #   rhs[(k, n), (bb, q)] = y[(bb, n), (k, q)]
        for bb in range(BB):                                     # static unroll
            for k in range(K):
                rhs_ref[k * N:(k + 1) * N, bb * Q:(bb + 1) * Q] = (
                    y[bb * N:(bb + 1) * N, k * Q:(k + 1) * Q])

    # Stage B: one MXU dot per (chunk, row tile):
    #   out[n', (bb, q)] = sum_{k, n} G[k, n', n] * (x[b] @ W_k)[n, q]
    out = jnp.dot(ghat_ref[...], rhs_ref[...],
                  preferred_element_type=jnp.float32)            # [TILE_N, BB*Q]
    o_ref[...] = (out + b_ref[...]).astype(o_ref.dtype)


def gcn_prepare(G, W, b, *, compute_dtype=jnp.bfloat16):
    """One-time layout plumbing for the constant operands (hoisted off the
    per-call path):
        Ghat[n', k*N + n] = G[k, n', n]   -> [N, K*N]
        W'  [c,  k*Q + q] = W[k*C + c, q] -> [C, K*Q]
    """
    K, N, _ = G.shape
    KC, Q = W.shape
    assert KC % K == 0
    C = KC // K
    ghat = jnp.transpose(G, (1, 0, 2)).reshape(N, K * N).astype(compute_dtype)
    wp = jnp.transpose(W.reshape(K, C, Q), (1, 0, 2)).reshape(C, K * Q)
    return ghat, wp.astype(compute_dtype), b.astype(jnp.float32)


def gcn_forward(ghat, wp, bias, x, *, tile_n=None, batch_block=None):
    """x: [B, N, C] -> [B, N, Q], using prepared (ghat, wp, bias)."""
    B, N, C = x.shape
    assert ghat.shape[0] == N and ghat.shape[1] % N == 0
    K = ghat.shape[1] // N
    assert wp.shape[0] == C and wp.shape[1] % K == 0
    Q = wp.shape[1] // K

    # Node-row tiling of Ghat / output.  Keeps Ghat's VMEM footprint at
    # TILE_N*K*N; 256-granularity suits v6e/v7x MXUs (use 128 on v5e).
    if tile_n is None:
        tile_n = N if N <= 256 else 256
    assert N % tile_n == 0 and (tile_n % 8 == 0 or tile_n == N)
    num_row_tiles = N // tile_n

    # Batch chunking ("parallel" axis -> v7x megacore).  Only chunk when the
    # chunked, lane-packed output stays (8,128)-legal: BB*Q % 128 == 0.
    if batch_block is None:
        half = B // 2
        if (B % 2 == 0 and half >= 1 and (half * Q) % 128 == 0
                and (half * N) % 8 == 0):
            batch_block = half
        else:
            batch_block = B                 # toy shapes: single chunk
    assert B % batch_block == 0
    num_chunks = B // batch_block
    if num_chunks > 1:
        assert (batch_block * Q) % 128 == 0 and (batch_block * N) % 8 == 0
    BB = batch_block

    compute_dtype = ghat.dtype
    xflat = x.reshape(B * N, C).astype(compute_dtype)            # [B*N, C]
    bias_packed = jnp.tile(bias.reshape(1, Q), (1, BB))          # [1, BB*Q] (tiny)

    # Explicit VMEM budget (v5e default scope is only 16 MiB; v7x has 64 MiB
    # physical).  Rough double-buffered estimate + headroom, clamped.
    esz = jnp.dtype(compute_dtype).itemsize
    est = (2 * tile_n * K * N * esz          # ghat tile (double-buffered)
           + 2 * BB * N * C * esz            # x chunk
           + 2 * C * K * Q * esz             # W'
           + 2 * BB * Q * 4                  # bias
           + K * N * BB * Q * esz            # rhs scratch
           + 2 * tile_n * BB * Q * 4)        # out tile
    vmem_limit = int(min(max(2 * est, 32 * 1024 * 1024), 64 * 1024 * 1024))

    kernel = functools.partial(gcn_kernel, n_nodes=N, k_hops=K,
                               batch_block=BB, dim_out=Q)

    out_packed = pl.pallas_call(
        kernel,
        out_shape=jax.ShapeDtypeStruct((N, B * Q), jnp.float32),
        grid_spec=pltpu.PrefetchScalarGridSpec(
            num_scalar_prefetch=0,
            grid=(num_chunks, num_row_tiles),   # (s: batch chunk, i: row tile)
            in_specs=[
                pl.BlockSpec((BB * N, C), lambda s, i: (s, 0)),      # x chunk
                pl.BlockSpec((tile_n, K * N), lambda s, i: (i, 0)),  # Ghat rows
                # W' / bias never change block index -> stay resident in VMEM.
                # (pipeline_mode=pl.Buffered(1) would also drop their second
                #  buffer, but they are KB-scale so the default is kept.)
                pl.BlockSpec((C, K * Q), lambda s, i: (0, 0)),       # W'
                pl.BlockSpec((1, BB * Q), lambda s, i: (0, 0)),      # bias
            ],
            out_specs=pl.BlockSpec((tile_n, BB * Q), lambda s, i: (i, s)),
            scratch_shapes=[pltpu.VMEM((K * N, BB * Q), compute_dtype)],
        ),
        compiler_params=pltpu.CompilerParams(
            # Batch chunks are independent -> shard across v7x's two TCs.
            # Row tiles carry the stage-A scratch -> must remain "arbitrary".
            dimension_semantics=("parallel", "arbitrary"),
            vmem_limit_bytes=vmem_limit,
        ),
    )(xflat, ghat, wp, bias_packed)

    # Lane-packed [N, B*Q] -> [B, N, Q].  Kept because Q < 128 (packed stores
    # are lane-dense); for Q >= 128 emit [B, N, Q] directly and drop this.
    # TODO(synk): for Q >= 128, switch out_specs to a 3-D [B, N, Q] block and
    # delete the unpack below.
    return jnp.transpose(out_packed.reshape(N, B, Q), (1, 0, 2))


def gcn_reference(G, x, W, b):
    """Plain-JAX reference mirroring the PyTorch forward (f32)."""
    K = G.shape[0]
    supports = [jnp.einsum('ij,bjp->bip', G[k], x) for k in range(K)]
    support_cat = jnp.concatenate(supports, axis=-1)
    return jnp.einsum('bip,pq->biq', support_cat, W) + b


if __name__ == "__main__":
    # Small shapes consistent with the module.
    B, N, C, K, dim_out = 2, 16, 8, 3, 32

    key = jax.random.PRNGKey(0)
    k_g, k_x, k_w = jax.random.split(key, 3)

    G = jax.random.normal(k_g, (K, N, N), dtype=jnp.float32)
    x = jax.random.normal(k_x, (B, N, C), dtype=jnp.float32)

    # Parameter init matching nn.init.xavier_normal_ / constant_(0):
    fan_in, fan_out = K * C, dim_out
    xavier_std = (2.0 / (fan_in + fan_out)) ** 0.5
    W = xavier_std * jax.random.normal(k_w, (K * C, dim_out), dtype=jnp.float32)
    b = jnp.zeros((dim_out,), dtype=jnp.float32)

    # One-time prep of the constant operands (hoisted out of the per-call path).
    ghat, wp, bias = gcn_prepare(G, W, b)

    ref = gcn_reference(G, x, W, b)

    # Default tiling (single row tile / single batch chunk at this toy shape).
    out = jax.block_until_ready(gcn_forward(ghat, wp, bias, x))
    assert out.shape == (B, N, dim_out)
    # bf16 operands with f32 accumulation -> loosened tolerance vs f32 reference.
    assert jnp.allclose(out, ref, atol=1e-1, rtol=2e-2), "mismatch vs reference"

    # Explicit node-row tiling (exercises the multi-step grid + scratch carry).
    out_tiled = jax.block_until_ready(gcn_forward(ghat, wp, bias, x, tile_n=8))
    assert jnp.allclose(out_tiled, ref, atol=1e-1, rtol=2e-2), "mismatch (tiled)"

    print("KERNEL_OK")
</pallas_src>

<mosaic_0001>
module attributes {stable_mosaic.version = 11 : i64} {
  func.func @gcn_kernel(%arg0: i32, %arg1: i32, %arg2: memref<32x8xbf16, #tpu.memory_space<vmem>>, %arg3: memref<16x48xbf16, #tpu.memory_space<vmem>>, %arg4: memref<8x96xbf16, #tpu.memory_space<vmem>>, %arg5: memref<1x64xf32, #tpu.memory_space<vmem>>, %arg6: memref<16x64xf32, #tpu.memory_space<vmem>>, %arg7: memref<48x64xbf16, #tpu.memory_space<vmem>>) attributes {dimension_semantics = [#tpu.dimension_semantics<parallel>, #tpu.dimension_semantics<arbitrary>], iteration_bounds = array<i64: 1, 1>, scalar_prefetch = 0 : i64, scratch_operands = 1 : i64, tpu.core_type = #tpu.core_type<tc>, window_params = [{transform_indices = @transform_0, window_bounds = array<i64: 32, 8>}, {transform_indices = @transform_1, window_bounds = array<i64: 16, 48>}, {pipeline_mode = #tpu.pipeline_mode<synchronous>, transform_indices = @transform_2, window_bounds = array<i64: 8, 96>}, {pipeline_mode = #tpu.pipeline_mode<synchronous>, transform_indices = @transform_3, window_bounds = array<i64: 1, 64>}, {transform_indices = @transform_4, window_bounds = array<i64: 16, 64>}]} {
    %c0_i32 = arith.constant 0 : i32
    %0 = arith.cmpi eq, %arg1, %c0_i32 : i32
    %1 = arith.extui %0 : i1 to i32
    %c0_i32_0 = arith.constant 0 : i32
    %2 = arith.cmpi ne, %1, %c0_i32_0 : i32
    scf.if %2 {
      %c0_8 = arith.constant 0 : index
      %c0_9 = arith.constant 0 : index
      %10 = vector.load %arg2[%c0_8, %c0_9] : memref<32x8xbf16, #tpu.memory_space<vmem>>, vector<32x8xbf16>
      %c0_10 = arith.constant 0 : index
      %c0_11 = arith.constant 0 : index
      %11 = vector.load %arg4[%c0_10, %c0_11] : memref<8x96xbf16, #tpu.memory_space<vmem>>, vector<8x96xbf16>
      %cst_12 = arith.constant dense<0.000000e+00> : vector<32x96xf32>
      %12 = tpu.matmul %10, %11, %cst_12 {dimension_numbers = #tpu.dot_dimension_numbers<[1], [0], [0], [1], [0, 0, 1, 1], [], []>} : vector<32x8xbf16>, vector<8x96xbf16>, vector<32x96xf32> -> vector<32x96xf32>
      %13 = arith.truncf %12 : vector<32x96xf32> to vector<32x96xbf16>
      %14 = vector.extract_strided_slice %13 {offsets = [0, 0], sizes = [16, 32], strides = [1, 1]} : vector<32x96xbf16> to vector<16x32xbf16>
      %c0_13 = arith.constant 0 : index
      %c0_14 = arith.constant 0 : index
      %15 = vector.load %arg7[%c0_13, %c0_14] : memref<48x64xbf16, #tpu.memory_space<vmem>>, vector<16x32xbf16>
      tpu.vector_store %arg7[%c0_13, %c0_14], %14 {strides = array<i32>} : memref<48x64xbf16, #tpu.memory_space<vmem>>, vector<16x32xbf16>,
      %16 = vector.extract_strided_slice %13 {offsets = [0, 32], sizes = [16, 32], strides = [1, 1]} : vector<32x96xbf16> to vector<16x32xbf16>
      %c16 = arith.constant 16 : index
      %c0_15 = arith.constant 0 : index
      %17 = vector.load %arg7[%c16, %c0_15] : memref<48x64xbf16, #tpu.memory_space<vmem>>, vector<16x32xbf16>
      tpu.vector_store %arg7[%c16, %c0_15], %16 {strides = array<i32>} : memref<48x64xbf16, #tpu.memory_space<vmem>>, vector<16x32xbf16>,
      %18 = vector.extract_strided_slice %13 {offsets = [0, 64], sizes = [16, 32], strides = [1, 1]} : vector<32x96xbf16> to vector<16x32xbf16>
      %c32 = arith.constant 32 : index
      %c0_16 = arith.constant 0 : index
      %19 = vector.load %arg7[%c32, %c0_16] : memref<48x64xbf16, #tpu.memory_space<vmem>>, vector<16x32xbf16>
      tpu.vector_store %arg7[%c32, %c0_16], %18 {strides = array<i32>} : memref<48x64xbf16, #tpu.memory_space<vmem>>, vector<16x32xbf16>,
      %20 = vector.extract_strided_slice %13 {offsets = [16, 0], sizes = [16, 32], strides = [1, 1]} : vector<32x96xbf16> to vector<16x32xbf16>
      %c0_17 = arith.constant 0 : index
      %c32_18 = arith.constant 32 : index
      %21 = vector.load %arg7[%c0_17, %c32_18] : memref<48x64xbf16, #tpu.memory_space<vmem>>, vector<16x32xbf16>
      tpu.vector_store %arg7[%c0_17, %c32_18], %20 {strides = array<i32>} : memref<48x64xbf16, #tpu.memory_space<vmem>>, vector<16x32xbf16>,
      %22 = vector.extract_strided_slice %13 {offsets = [16, 32], sizes = [16, 32], strides = [1, 1]} : vector<32x96xbf16> to vector<16x32xbf16>
      %c16_19 = arith.constant 16 : index
      %c32_20 = arith.constant 32 : index
      %23 = vector.load %arg7[%c16_19, %c32_20] : memref<48x64xbf16, #tpu.memory_space<vmem>>, vector<16x32xbf16>
      tpu.vector_store %arg7[%c16_19, %c32_20], %22 {strides = array<i32>} : memref<48x64xbf16, #tpu.memory_space<vmem>>, vector<16x32xbf16>,
      %24 = vector.extract_strided_slice %13 {offsets = [16, 64], sizes = [16, 32], strides = [1, 1]} : vector<32x96xbf16> to vector<16x32xbf16>
      %c32_21 = arith.constant 32 : index
      %c32_22 = arith.constant 32 : index
      %25 = vector.load %arg7[%c32_21, %c32_22] : memref<48x64xbf16, #tpu.memory_space<vmem>>, vector<16x32xbf16>
      tpu.vector_store %arg7[%c32_21, %c32_22], %24 {strides = array<i32>} : memref<48x64xbf16, #tpu.memory_space<vmem>>, vector<16x32xbf16>,
    } else {
    }
    %c0 = arith.constant 0 : index
    %c0_1 = arith.constant 0 : index
    %3 = vector.load %arg3[%c0, %c0_1] : memref<16x48xbf16, #tpu.memory_space<vmem>>, vector<16x48xbf16>
    %c0_2 = arith.constant 0 : index
    %c0_3 = arith.constant 0 : index
    %4 = vector.load %arg7[%c0_2, %c0_3] : memref<48x64xbf16, #tpu.memory_space<vmem>>, vector<48x64xbf16>
    %cst = arith.constant dense<0.000000e+00> : vector<16x64xf32>
    %5 = tpu.matmul %3, %4, %cst {dimension_numbers = #tpu.dot_dimension_numbers<[1], [0], [0], [1], [0, 0, 1, 1], [], []>} : vector<16x48xbf16>, vector<48x64xbf16>, vector<16x64xf32> -> vector<16x64xf32>
    %c0_4 = arith.constant 0 : index
    %c0_5 = arith.constant 0 : index
    %6 = vector.load %arg5[%c0_4, %c0_5] : memref<1x64xf32, #tpu.memory_space<vmem>>, vector<1x64xf32>
    %7 = vector.broadcast %6 : vector<1x64xf32> to vector<16x64xf32>
    %8 = arith.addf %5, %7 : vector<16x64xf32>
    %c0_6 = arith.constant 0 : index
    %c0_7 = arith.constant 0 : index
    %9 = vector.load %arg6[%c0_6, %c0_7] : memref<16x64xf32, #tpu.memory_space<vmem>>, vector<16x64xf32>
    tpu.vector_store %arg6[%c0_6, %c0_7], %8 {strides = array<i32>} : memref<16x64xf32, #tpu.memory_space<vmem>>, vector<16x64xf32>,
    return
  }
  func.func @transform_0(%arg0: i32, %arg1: i32) -> (i32, i32) {
    %c0_i32 = arith.constant 0 : i32
    %c0_i32_0 = arith.constant 0 : i32
    return %arg0, %c0_i32 : i32, i32
  }
  func.func @transform_1(%arg0: i32, %arg1: i32) -> (i32, i32) {
    %c0_i32 = arith.constant 0 : i32
    %c0_i32_0 = arith.constant 0 : i32
    return %arg1, %c0_i32 : i32, i32
  }
  func.func @transform_2(%arg0: i32, %arg1: i32) -> (i32, i32) {
    %c0_i32 = arith.constant 0 : i32
    %c0_i32_0 = arith.constant 0 : i32
    %c0_i32_1 = arith.constant 0 : i32
    return %c0_i32, %c0_i32_0 : i32, i32
  }
  func.func @transform_3(%arg0: i32, %arg1: i32) -> (i32, i32) {
    %c0_i32 = arith.constant 0 : i32
    %c0_i32_0 = arith.constant 0 : i32
    %c0_i32_1 = arith.constant 0 : i32
    return %c0_i32, %c0_i32_0 : i32, i32
  }
  func.func @transform_4(%arg0: i32, %arg1: i32) -> (i32, i32) {
    %c0_i32 = arith.constant 0 : i32
    return %arg1, %arg0 : i32, i32
  }
}

</mosaic_0001>

<llo_original>
// kernel: tpu_custom_call.1
$region0: #{tpu_custom_call.1}
  #allocation0 [shape = 'u32[]', space=smem, size = 0x4, offset = 0x4, fixed_abs, tag = 'smem constant byte address 0x4 - core index']
  #allocation1 [shape = 'u32[144,128]{1,0:T(1,128)}', space=vmem, size = 0x12000, scoped, tag = 'internal scratch']
  #allocation2 [shape = 'bf16[48,64]{1,0:T(16,128)(2,1)}', space=vmem, size = 0x3000, scoped, tag = 'scratch operand']
  %s0 = inlined_call_operand.vmem [shape: bf16[32,8], index: 0, kind: input, shape index: {}]
  %s1 = inlined_call_operand.vmem [shape: bf16[16,48], index: 1, kind: input, shape index: {}]
  %s2 = inlined_call_operand.vmem [shape: bf16[8,96], index: 2, kind: input, shape index: {}]
  %s3 = inlined_call_operand.vmem [shape: f32[1,64], index: 3, kind: input, shape index: {}]
  %s4 = inlined_call_operand.hbm [shape: f32[16,64], index: 4, kind: output, shape index: {}]
  %s5 = sld [smem:[#allocation0]]
  $region30: #{tpu_custom_call.1} parent=0
    _
  %s7 = ssub.s32 1, %s5
  %s8 = scalar_select 0, %s7, %s5
  $region1: #{tpu_custom_call.1} parent=0
    #allocation3 [shape = 'u8[8192]{0}', space=vmem, size = 0x2000, scoped, tag = 'output window, operand 0, single buffered']
    #allocation4 [shape = 's32[1]{0}', space=sflag, size = 0x4, scoped, tag = 'scoped memory for tpu_custom_call.1']
    %9 = vsyncpa [#allocation4], 0
    // Predicated region
    $region2: #{tpu_custom_call.1} parent=1 // pred_check
      _
    $region3: #{tpu_custom_call.1} parent=1 // pred_check_branch
      %11 = sbr.rel (0) target = $region5
    $region4: #{tpu_custom_call.1} parent=1 // pred_region
      _
    $region5: #{tpu_custom_call.1} parent=1 // pred_fallthru
      _
    // Predicated region
    $region6: #{tpu_custom_call.1} parent=1 // pred_check
      _
    $region7: #{tpu_custom_call.1} parent=1 // pred_check_branch
      %13 = sbr.rel (0) target = $region9
    $region8: #{tpu_custom_call.1} parent=1 // pred_region
      _
    $region9: #{tpu_custom_call.1} parent=1 // pred_fallthru
      _
    // Predicated region
    $region10: #{tpu_custom_call.1} parent=1 // pred_check
      _
    $region11: #{tpu_custom_call.1} parent=1 // pred_check_branch
      %15 = sbr.rel (0) target = $region13
    $region12: #{tpu_custom_call.1} parent=1 // pred_region
      _
    $region13: #{tpu_custom_call.1} parent=1 // pred_fallthru
      _
    // Predicated region
    $region14: #{tpu_custom_call.1} parent=1 // pred_check
      _
    $region15: #{tpu_custom_call.1} parent=1 // pred_check_branch
      %17 = sbr.rel (0) target = $region17
    $region16: #{tpu_custom_call.1} parent=1 // pred_region
      _
    $region17: #{tpu_custom_call.1} parent=1 // pred_fallthru
      _
    %p19 = scmp.eq.s32.totalorder 0, 0
    // Predicated region
    $region18: #{tpu_custom_call.1} parent=1 // pred_check
      %p20 = pneg %p19
    $region19: #{tpu_custom_call.1} parent=1 // pred_check_branch
      %22 = sbr.rel (%p20) target = $region21
    $region20: #{tpu_custom_call.1} parent=1 // pred_region
      %v23 = vld [vmem:[%s0] sm:$0xf]
      %v24 = vld [vmem:[%s0 + $0x4] sm:$0xf]
      %v25 = vld [vmem:[%s0 + $0x8] sm:$0xf]
      %v26 = vld [vmem:[%s0 + $0xc] sm:$0xf]
      %v27 = vld [vmem:[%s2] sm:$0xf]
      %v32 = vunpack.c.l.b16 %v23
      %v33 = vunpack.c.l.b16 %v24
      %v34 = vunpack.c.l.b16 %v25
      %v35 = vunpack.c.l.b16 %v26
      %v36 = vpack.c.b16 %v33, %v32
      %v37 = vpack.c.b16 %v35, %v34
      %vm38 = vcmask 64512
      %v40 = vsel %vm38, %v36, 0
      %v43 = vsel %vm38, %v37, 0
      %vm45 = vcmask 1043456
      %v47 = vsel %vm45, %v27, 0
      %49 = vmatprep.subr.bf16.mxu0 0
      %50 = vmatpush1.bf16.msra.mxu0 %v47
      %51 = vmatprep.subr.bf16.mxu0 0
      %52 = vmatpush1.bf16.msra.mxu0 0
      %53 = vmatprep.subr.bf16.mxu0 0
      %54 = vmatpush1.bf16.msra.mxu0 0
      %55 = vmatprep.subr.bf16.mxu0 0
      %56 = vmatpush1.bf16.msra.mxu0 0
      %57 = vmatprep.subr.bf16.mxu0 0
      %58 = vmatpush1.bf16.msra.mxu0 0
      %59 = vmatprep.subr.bf16.mxu0 0
      %60 = vmatpush1.bf16.msra.mxu0 0
      %61 = vmatprep.subr.bf16.mxu0 0
      %62 = vmatpush1.bf16.msra.mxu0 0
      %63 = vmatprep.subr.bf16.mxu0 0
      %64 = vmatpush1.bf16.msra.mxu0 0
      %65 = vmatprep.subr.bf16.mxu0 0
      %66 = vmatpush1.bf16.msra.mxu0 0
      %67 = vmatprep.subr.bf16.mxu0 0
      %68 = vmatpush1.bf16.msra.mxu0 0
      %69 = vmatprep.subr.bf16.mxu0 0
      %70 = vmatpush1.bf16.msra.mxu0 0
      %71 = vmatprep.subr.bf16.mxu0 0
      %72 = vmatpush1.bf16.msra.mxu0 0
      %73 = vmatprep.subr.bf16.mxu0 0
      %74 = vmatpush1.bf16.msra.mxu0 0
      %75 = vmatprep.subr.bf16.mxu0 0
      %76 = vmatpush1.bf16.msra.mxu0 0
      %77 = vmatprep.subr.bf16.mxu0 0
      %78 = vmatpush1.bf16.msra.mxu0 0
      %79 = vmatprep.subr.bf16.mxu0 0
      %80 = vmatpush1.bf16.msra.mxu0 0
      %81 = vmatprep.mubr.bf16.mxu0 0
      %82 = vmatmul.mubr.bf16.gmra.mrb[0].mxu0 %v40
      %v83 = vpop.f32.mrb[0].mxu0
      %v84 = vadd.f32 0.0, %v83
      %v85 = vpop.f32.mrb[0].mxu0
      %v86 = vpop.f32.mrb[0].mxu0
      %v87 = vadd.f32 0.0, %v86
      %v88 = vpop.f32.mrb[0].mxu0
      %89 = vmatprep.mubr.bf16.mxu0 0
      %90 = vmatmul.mubr.bf16.gmra.mrb[0].mxu0 %v43
      %v91 = vpop.f32.mrb[0].mxu0
      %v92 = vadd.f32 0.0, %v91
      %v93 = vpop.f32.mrb[0].mxu0
      %v94 = vpop.f32.mrb[0].mxu0
      %v95 = vadd.f32 0.0, %v94
      %v96 = vpop.f32.mrb[0].mxu0
      %97 = vdwg.mxu0
      %v98 = vpack.c.bf16 %v87, %v84
      %v99 = vpack.c.bf16 %v95, %v92
      %vm100 = vcmask 261120
      %101 = vst.msk [vmem:[#allocation2] sm:$0xff] %vm100, %v98
      %103 = vrot.lane.b32.xlu0 %v98, 96
      %v104 = vpop.permute.xlu0 %103
      %106 = vst.msk [vmem:[#allocation2 + $0x8] sm:$0xff] %vm100, %v104
      %107 = vrot.lane.b32.xlu0 %v98, 64
      %v108 = vpop.permute.xlu0 %107
      %110 = vst.msk [vmem:[#allocation2 + $0x10] sm:$0xff] %vm100, %v108
      %112 = vrot.lane.b32.xlu0 %v99, 32
      %v113 = vpop.permute.xlu0 %112
      %vm115 = vcmask 523520
      %116 = vst.msk [vmem:[#allocation2] sm:$0xff] %vm115, %v113
      %117 = vst.msk [vmem:[#allocation2 + $0x8] sm:$0xff] %vm115, %v99
      %118 = vrot.lane.b32.xlu0 %v99, 96
      %v119 = vpop.permute.xlu0 %118
      %121 = vst.msk [vmem:[#allocation2 + $0x10] sm:$0xff] %vm115, %v119
    $region21: #{tpu_custom_call.1} parent=1 // pred_fallthru
      _
    %v122 = vld [vmem:[%s1] sm:$0xf]
    %v123 = vld [vmem:[%s1 + $0x4] sm:$0xf]
    %v124 = vld [vmem:[#allocation2] sm:$0xff]
    %v125 = vld [vmem:[#allocation2 + $0x8] sm:$0xff]
    %v126 = vld [vmem:[#allocation2 + $0x10] sm:$0xff]
    %v127 = vld [vmem:[%s3] sm:$0x1]
    %v129 = vlaneseq
    %v130 = vshrl.u32 %v129, 7
    %v131 = vsub.s32 0, %v130
    %v132 = vrot.slane %v127, %v131
    %v136 = vunpack.c.l.b16 %v122
    %v137 = vunpack.c.l.b16 %v123
    %v138 = vpack.c.b16 %v137, %v136
    %vm139 = vcmask 392192
    %v141 = vsel %vm139, %v138, 0
    %143 = vmatprep.subr.bf16.mxu0 0
    %144 = vmatpush1.bf16.msra.mxu0 %v124
    %145 = vmatprep.subr.bf16.mxu0 0
    %146 = vmatpush1.bf16.msra.mxu0 %v125
    %147 = vmatprep.subr.bf16.mxu0 0
    %148 = vmatpush1.bf16.msra.mxu0 %v126
    %149 = vmatprep.subr.bf16.mxu0 0
    %150 = vmatpush1.bf16.msra.mxu0 0
    %151 = vmatprep.subr.bf16.mxu0 0
    %152 = vmatpush1.bf16.msra.mxu0 0
    %153 = vmatprep.subr.bf16.mxu0 0
    %154 = vmatpush1.bf16.msra.mxu0 0
    %155 = vmatprep.subr.bf16.mxu0 0
    %156 = vmatpush1.bf16.msra.mxu0 0
    %157 = vmatprep.subr.bf16.mxu0 0
    %158 = vmatpush1.bf16.msra.mxu0 0
    %159 = vmatprep.subr.bf16.mxu0 0
    %160 = vmatpush1.bf16.msra.mxu0 0
    %161 = vmatprep.subr.bf16.mxu0 0
    %162 = vmatpush1.bf16.msra.mxu0 0
    %163 = vmatprep.subr.bf16.mxu0 0
    %164 = vmatpush1.bf16.msra.mxu0 0
    %165 = vmatprep.subr.bf16.mxu0 0
    %166 = vmatpush1.bf16.msra.mxu0 0
    %167 = vmatprep.subr.bf16.mxu0 0
    %168 = vmatpush1.bf16.msra.mxu0 0
    %169 = vmatprep.subr.bf16.mxu0 0
    %170 = vmatpush1.bf16.msra.mxu0 0
    %171 = vmatprep.subr.bf16.mxu0 0
    %172 = vmatpush1.bf16.msra.mxu0 0
    %173 = vmatprep.subr.bf16.mxu0 0
    %174 = vmatpush1.bf16.msra.mxu0 0
    %175 = vmatprep.mubr.bf16.mxu0 0
    %176 = vmatmul.mubr.bf16.gmra.mrb[0].mxu0 %v141
    %v177 = vpop.f32.mrb[0].mxu0
    %v178 = vadd.f32 %v132, %v177
    %v179 = vpop.f32.mrb[0].mxu0
    %v180 = vpop.f32.mrb[0].mxu0
    %v181 = vadd.f32 %v132, %v180
    %v182 = vpop.f32.mrb[0].mxu0
    %183 = vdwg.mxu0
    %vm184 = vcmask 523264
    %185 = vst.msk [vmem:[#allocation3] sm:$0xff] %vm184, %v178
    %186 = vst.msk [vmem:[#allocation3 + $0x8] sm:$0xff] %vm184, %v181
    // Predicated region
    $region22: #{tpu_custom_call.1} parent=1 // pred_check
      _
    $region23: #{tpu_custom_call.1} parent=1 // pred_check_branch
      %188 = sbr.rel (0) target = $region25
    $region24: #{tpu_custom_call.1} parent=1 // pred_region
      %s190 = ssub.s32 256, 256
      %191 = vsyncadd [#allocation4], %s190
      %s192 = sshll.u32 [#allocation3], 4
      %s193 = int_to_ptr.vmem [resolvable:$true] %s192
      %198 = dma.vmem_to_hbm [thread:$0]  %s193, 256, %s4, [#allocation4], 128, 128, 8
    $region25: #{tpu_custom_call.1} parent=1 // pred_fallthru
      _
    // Predicated region
    $region26: #{tpu_custom_call.1} parent=1 // pred_check
      _
    $region27: #{tpu_custom_call.1} parent=1 // pred_check_branch
      %200 = sbr.rel (0) target = $region29
    $region28: #{tpu_custom_call.1} parent=1 // pred_region
      %201 = dma.done [#allocation4], 256
    $region29: #{tpu_custom_call.1} parent=1 // pred_fallthru
      _
    %202 = vsyncpa [#allocation4], 1

</llo_original>
